<compile_context>
chip_gen: v6e
topology: v6e:2x2x1
jax: 0.10.0
libtpu: 0.0.40
codegen_flags: <defaults>
</compile_context>

<pallas_src>
import functools
import math

import jax
import jax.numpy as jnp
from jax.experimental import pallas as pl
from jax.experimental.pallas import tpu as pltpu


_VMEM_LIMIT = 32 * 1024 * 1024  # scoped-VMEM request; tiles leave ample headroom


def _pick_tile(dim, candidates):
    """Largest candidate tile that divides `dim`, else the whole dim."""
    for c in candidates:
        if dim >= c and dim % c == 0:
            return c
    return dim


# ----------------------------------------------------------------------------
# Tiled matmul + bias (+ optional activation)
# ----------------------------------------------------------------------------

def _matmul_bias_kernel(x_ref, w_ref, b_ref, o_ref, acc_ref, *, activation):
    @pl.when(pl.program_id(2) == 0)
    def _():
        acc_ref[...] = jnp.zeros_like(acc_ref)

    acc_ref[...] += jnp.dot(x_ref[...], w_ref[...],
                            preferred_element_type=jnp.float32)

    @pl.when(pl.program_id(2) == pl.num_programs(2) - 1)
    def _():
        y = acc_ref[...] + b_ref[...]
        if activation == "relu":
            y = jnp.maximum(y, 0.0)
        elif activation == "gelu":
            # TODO(synk): HF DistilBERT uses exact (erf) GELU; the tanh
            # approximation deviates ~1e-3.
            y = jax.nn.gelu(y, approximate=True)
        o_ref[...] = y.astype(o_ref.dtype)


def linear(x, w, b, activation="none", out_dtype=jnp.bfloat16):
    """o = act(x @ w + b); x:(M,K) bf16, w:(K,N) bf16, b:(1,N) f32."""
    M, K = x.shape
    N = w.shape[1]
    tm = _pick_tile(M, (256, 128))
    tn = _pick_tile(N, (512, 256, 128))
    tk = _pick_tile(K, (512, 256, 128))
    return pl.pallas_call(
        functools.partial(_matmul_bias_kernel, activation=activation),
        out_shape=jax.ShapeDtypeStruct((M, N), out_dtype),
        grid=(M // tm, N // tn, K // tk),
        in_specs=[
            pl.BlockSpec((tm, tk), lambda i, j, k: (i, k)),
            pl.BlockSpec((tk, tn), lambda i, j, k: (k, j)),
            pl.BlockSpec((1, tn), lambda i, j, k: (0, j)),
        ],
        out_specs=pl.BlockSpec((tm, tn), lambda i, j, k: (i, j)),
        scratch_shapes=[pltpu.VMEM((tm, tn), jnp.float32)],
        compiler_params=pltpu.CompilerParams(
            dimension_semantics=("parallel", "parallel", "arbitrary"),
            vmem_limit_bytes=_VMEM_LIMIT),
    )(x, w, b)


# ----------------------------------------------------------------------------
# Tiled matmul + bias + residual-add + LayerNorm (fused epilogue)
# ----------------------------------------------------------------------------

def _matmul_add_ln_kernel(x_ref, w_ref, b_ref, r_ref, g_ref, bt_ref,
                          o_ref, acc_ref, *, eps):
    @pl.when(pl.program_id(1) == 0)
    def _():
        acc_ref[...] = jnp.zeros_like(acc_ref)

    acc_ref[...] += jnp.dot(x_ref[...], w_ref[...],
                            preferred_element_type=jnp.float32)

    @pl.when(pl.program_id(1) == pl.num_programs(1) - 1)
    def _():
        h = acc_ref[...] + b_ref[...] + r_ref[...].astype(jnp.float32)
        mean = jnp.mean(h, axis=-1, keepdims=True)
        c = h - mean
        var = jnp.mean(c * c, axis=-1, keepdims=True)
        y = c * jax.lax.rsqrt(var + eps) * g_ref[...] + bt_ref[...]
        o_ref[...] = y.astype(o_ref.dtype)


def linear_add_layernorm(x, w, b, res, gamma, beta, eps=1e-12,
                         out_dtype=jnp.bfloat16):
    """o = LayerNorm(x @ w + b + res); LN over the full output dim N."""
    M, K = x.shape
    N = w.shape[1]                      # LN needs whole N per output tile
    tm = _pick_tile(M, (256, 128))
    tk = _pick_tile(K, (512, 256, 128))
    return pl.pallas_call(
        functools.partial(_matmul_add_ln_kernel, eps=eps),
        out_shape=jax.ShapeDtypeStruct((M, N), out_dtype),
        grid=(M // tm, K // tk),
        in_specs=[
            pl.BlockSpec((tm, tk), lambda i, k: (i, k)),
            pl.BlockSpec((tk, N), lambda i, k: (k, 0)),
            pl.BlockSpec((1, N), lambda i, k: (0, 0)),
            pl.BlockSpec((tm, N), lambda i, k: (i, 0)),
            pl.BlockSpec((1, N), lambda i, k: (0, 0)),
            pl.BlockSpec((1, N), lambda i, k: (0, 0)),
        ],
        out_specs=pl.BlockSpec((tm, N), lambda i, k: (i, 0)),
        scratch_shapes=[pltpu.VMEM((tm, N), jnp.float32)],
        compiler_params=pltpu.CompilerParams(
            dimension_semantics=("parallel", "arbitrary"),
            vmem_limit_bytes=_VMEM_LIMIT),
    )(x, w, b, res, gamma, beta)


# ----------------------------------------------------------------------------
# Standalone LayerNorm (embedding LN — no residual, no preceding matmul)
# ----------------------------------------------------------------------------

def _layernorm_kernel(x_ref, g_ref, b_ref, o_ref, *, eps):
    x = x_ref[...].astype(jnp.float32)
    mean = jnp.mean(x, axis=-1, keepdims=True)
    c = x - mean
    var = jnp.mean(c * c, axis=-1, keepdims=True)
    o_ref[...] = (c * jax.lax.rsqrt(var + eps) * g_ref[...]
                  + b_ref[...]).astype(o_ref.dtype)


def layernorm(x, gamma, beta, eps=1e-12, out_dtype=jnp.bfloat16):
    M, H = x.shape
    tm = _pick_tile(M, (512, 256, 128))
    return pl.pallas_call(
        functools.partial(_layernorm_kernel, eps=eps),
        out_shape=jax.ShapeDtypeStruct((M, H), out_dtype),
        grid=(M // tm,),
        in_specs=[
            pl.BlockSpec((tm, H), lambda i: (i, 0)),
            pl.BlockSpec((1, H), lambda i: (0, 0)),
            pl.BlockSpec((1, H), lambda i: (0, 0)),
        ],
        out_specs=pl.BlockSpec((tm, H), lambda i: (i, 0)),
        compiler_params=pltpu.CompilerParams(
            dimension_semantics=("parallel",),
            vmem_limit_bytes=_VMEM_LIMIT),
    )(x, gamma, beta)


# ----------------------------------------------------------------------------
# Multi-head attention: all heads of one batch item per grid step.
# Input is the fused QKV projection [B, S, 3H] (scale already folded into Q).
# ----------------------------------------------------------------------------

def _attention_kernel(qkv_ref, bias_ref, ctx_ref, probs_ref, *, n_heads, dh):
    H = n_heads * dh
    qkv = qkv_ref[0]                       # (S, 3H) bf16
    bias = bias_ref[...]                   # (1, S) f32 additive (0 / -1e9)

    ctx_parts = []
    for h in range(n_heads):
        q = qkv[:, h * dh:(h + 1) * dh]
        k = qkv[:, H + h * dh:H + (h + 1) * dh]
        v = qkv[:, 2 * H + h * dh:2 * H + (h + 1) * dh]

        scores = jax.lax.dot_general(
            q, k, (((1,), (1,)), ((), ())),
            preferred_element_type=jnp.float32) + bias          # (S, S) f32

        mx = jnp.max(scores, axis=-1, keepdims=True)
        e = jnp.exp(scores - mx)
        p = e * pl.reciprocal(jnp.sum(e, axis=-1, keepdims=True), approx=True)

        ctx_parts.append(jnp.dot(p.astype(v.dtype), v,
                                 preferred_element_type=jnp.float32))
        probs_ref[0, h] = p.astype(probs_ref.dtype)

    # Single lane-dense (S, H) store instead of n_heads narrow column stores.
    ctx_ref[0] = jnp.concatenate(ctx_parts, axis=-1).astype(ctx_ref.dtype)


def attention(qkv, attn_bias, n_heads, probs_dtype=jnp.bfloat16):
    B, S, threeH = qkv.shape
    H = threeH // 3
    dh = H // n_heads
    ctx, probs = pl.pallas_call(
        functools.partial(_attention_kernel, n_heads=n_heads, dh=dh),
        out_shape=(
            jax.ShapeDtypeStruct((B, S, H), qkv.dtype),
            jax.ShapeDtypeStruct((B, n_heads, S, S), probs_dtype),
        ),
        grid=(B,),
        in_specs=[
            pl.BlockSpec((1, S, threeH), lambda b: (b, 0, 0)),
            pl.BlockSpec((1, S), lambda b: (b, 0)),
        ],
        out_specs=(
            pl.BlockSpec((1, S, H), lambda b: (b, 0, 0)),
            pl.BlockSpec((1, n_heads, S, S), lambda b: (b, 0, 0, 0)),
        ),
        compiler_params=pltpu.CompilerParams(
            dimension_semantics=("parallel",),
            vmem_limit_bytes=_VMEM_LIMIT),
    )(qkv, attn_bias)
    return ctx, probs


# ----------------------------------------------------------------------------
# DistilBERT-for-classification forward (wrapper / glue)
# ----------------------------------------------------------------------------

def distilbert_clf_forward(params, sent_id, mask):
    B, S = sent_id.shape
    H = params["hidden"]
    n_heads = params["n_heads"]

    # Additive attention bias: 0 where attend, -1e9 where masked.
    attn_bias = (mask.astype(jnp.float32) - 1.0) * 1e9              # (B, S)

    # Embeddings: word + position gather stays in plain JAX glue.
    word = params["word_emb"][sent_id]                               # (B,S,H)
    pos = params["pos_emb"][jnp.arange(S)][None, :, :]
    emb = (word + pos).reshape(B * S, H)
    h = layernorm(emb, params["emb_ln_g"], params["emb_ln_b"])       # bf16

    hidden_states = [h.reshape(B, S, H)]
    attentions = []

    for lp in params["layers"]:
        x2 = h                                                       # (B*S, H)

        # Fused Q/K/V projection (one pass over x2).
        qkv = linear(x2, lp["qkv_w"], lp["qkv_b"])                   # (B*S, 3H)
        ctx, probs = attention(qkv.reshape(B, S, 3 * H), attn_bias, n_heads)
        ctx = ctx.reshape(B * S, H)

        # Output projection + residual + LayerNorm, fused.
        sa = linear_add_layernorm(ctx, lp["o_w"], lp["o_b"], x2,
                                  lp["sa_ln_g"], lp["sa_ln_b"])

        # FFN: GELU matmul, then FF2 + residual + LayerNorm fused.
        ff1 = linear(sa, lp["ff1_w"], lp["ff1_b"], activation="gelu")
        h = linear_add_layernorm(ff1, lp["ff2_w"], lp["ff2_b"], sa,
                                 lp["out_ln_g"], lp["out_ln_b"])

        hidden_states.append(h.reshape(B, S, H))
        attentions.append(probs)

    # Classification head: [CLS] token -> pre_classifier + ReLU -> classifier.
    cls = hidden_states[-1][:, 0, :]                                 # (B, H)
    pooled = linear(cls, params["pre_w"], params["pre_b"], activation="relu")
    logits = linear(pooled, params["clf_w"], params["clf_b"],
                    out_dtype=jnp.float32)[:, :params["n_labels"]]

    # hidden_states / attentions are bf16 (intentional: halves HBM traffic).
    return logits, tuple(hidden_states), tuple(attentions)


# ----------------------------------------------------------------------------
# Deterministic parameter init (synthetic weights, DistilBERT-shaped) and
# conversion to the kernel-ready layout (bf16, fused QKV, folded scale,
# lane-padded classifier).
# ----------------------------------------------------------------------------

def init_params(key, vocab, max_pos, H, n_heads, ffn, n_layers, n_labels):
    keys = iter(jax.random.split(key, 8 * n_layers + 16))

    def dense(shape):
        return jax.random.normal(next(keys), shape, jnp.float32) * 0.02

    p = {
        "n_heads": n_heads,
        "word_emb": dense((vocab, H)),
        "pos_emb": dense((max_pos, H)),
        "emb_ln_g": jnp.ones((1, H), jnp.float32),
        "emb_ln_b": jnp.zeros((1, H), jnp.float32),
        "layers": [],
    }
    for _ in range(n_layers):
        p["layers"].append({
            "q_w": dense((H, H)), "q_b": jnp.zeros((1, H), jnp.float32),
            "k_w": dense((H, H)), "k_b": jnp.zeros((1, H), jnp.float32),
            "v_w": dense((H, H)), "v_b": jnp.zeros((1, H), jnp.float32),
            "o_w": dense((H, H)), "o_b": jnp.zeros((1, H), jnp.float32),
            "sa_ln_g": jnp.ones((1, H), jnp.float32),
            "sa_ln_b": jnp.zeros((1, H), jnp.float32),
            "ff1_w": dense((H, ffn)), "ff1_b": jnp.zeros((1, ffn), jnp.float32),
            "ff2_w": dense((ffn, H)), "ff2_b": jnp.zeros((1, H), jnp.float32),
            "out_ln_g": jnp.ones((1, H), jnp.float32),
            "out_ln_b": jnp.zeros((1, H), jnp.float32),
        })
    p["pre_w"] = dense((H, H))
    p["pre_b"] = jnp.zeros((1, H), jnp.float32)
    p["clf_w"] = dense((H, n_labels))
    p["clf_b"] = jnp.zeros((1, n_labels), jnp.float32)
    return p


def prepare_params(raw):
    """Cast weights to bf16, fuse QKV (with 1/sqrt(dh) folded into Q),
    pad the classifier to a lane-dense 128-wide output."""
    n_heads = raw["n_heads"]
    H = raw["word_emb"].shape[1]
    dh = H // n_heads
    scale = 1.0 / math.sqrt(dh)
    bf = lambda a: a.astype(jnp.bfloat16)

    p = {
        "hidden": H,
        "n_heads": n_heads,
        "n_labels": raw["clf_w"].shape[1],
        "word_emb": raw["word_emb"],
        "pos_emb": raw["pos_emb"],
        "emb_ln_g": raw["emb_ln_g"],
        "emb_ln_b": raw["emb_ln_b"],
        "layers": [],
    }
    for lp in raw["layers"]:
        p["layers"].append({
            "qkv_w": bf(jnp.concatenate(
                [lp["q_w"] * scale, lp["k_w"], lp["v_w"]], axis=1)),
            "qkv_b": jnp.concatenate(
                [lp["q_b"] * scale, lp["k_b"], lp["v_b"]], axis=1),
            "o_w": bf(lp["o_w"]), "o_b": lp["o_b"],
            "sa_ln_g": lp["sa_ln_g"], "sa_ln_b": lp["sa_ln_b"],
            "ff1_w": bf(lp["ff1_w"]), "ff1_b": lp["ff1_b"],
            "ff2_w": bf(lp["ff2_w"]), "ff2_b": lp["ff2_b"],
            "out_ln_g": lp["out_ln_g"], "out_ln_b": lp["out_ln_b"],
        })
    p["pre_w"] = bf(raw["pre_w"])
    p["pre_b"] = raw["pre_b"]

    n_labels = raw["clf_w"].shape[1]
    pad = (-n_labels) % 128
    p["clf_w"] = bf(jnp.pad(raw["clf_w"], ((0, 0), (0, pad))))
    p["clf_b"] = jnp.pad(raw["clf_b"], ((0, 0), (0, pad)))
    return p


# ----------------------------------------------------------------------------

if __name__ == "__main__":
    B, S = 2, 8
    VOCAB, MAX_POS, H, N_HEADS, FFN, N_LAYERS, N_LABELS = 100, 16, 32, 4, 64, 2, 2

    key = jax.random.PRNGKey(0)
    pkey, ikey = jax.random.split(key)
    raw_params = init_params(pkey, VOCAB, MAX_POS, H, N_HEADS, FFN,
                             N_LAYERS, N_LABELS)
    params = prepare_params(raw_params)

    sent_id = jax.random.randint(ikey, (B, S), 0, VOCAB, dtype=jnp.int32)
    mask = jnp.array([[1, 1, 1, 1, 1, 1, 1, 1],
                      [1, 1, 1, 1, 1, 1, 0, 0]], dtype=jnp.int32)

    logits, hidden_states, attentions = distilbert_clf_forward(
        params, sent_id, mask)
    jax.block_until_ready((logits, hidden_states, attentions))

    assert logits.shape == (B, N_LABELS)
    assert len(hidden_states) == N_LAYERS + 1
    assert all(h.shape == (B, S, H) for h in hidden_states)
    assert len(attentions) == N_LAYERS
    assert all(a.shape == (B, N_HEADS, S, S) for a in attentions)
    assert bool(jnp.all(jnp.isfinite(logits)))

    print("KERNEL_OK")
</pallas_src>

<mosaic_0001>
module attributes {stable_mosaic.version = 11 : i64} {
  func.func @_layernorm_kernel(%arg0: i32, %arg1: memref<16x32xf32, #tpu.memory_space<vmem>>, %arg2: memref<1x32xf32, #tpu.memory_space<vmem>>, %arg3: memref<1x32xf32, #tpu.memory_space<vmem>>, %arg4: memref<16x32xbf16, #tpu.memory_space<vmem>>) attributes {dimension_semantics = [#tpu.dimension_semantics<parallel>], iteration_bounds = array<i64: 1>, scalar_prefetch = 0 : i64, scratch_operands = 0 : i64, tpu.core_type = #tpu.core_type<tc>, window_params = [{transform_indices = @transform_0, window_bounds = array<i64: 16, 32>}, {pipeline_mode = #tpu.pipeline_mode<synchronous>, transform_indices = @transform_1, window_bounds = array<i64: 1, 32>}, {pipeline_mode = #tpu.pipeline_mode<synchronous>, transform_indices = @transform_2, window_bounds = array<i64: 1, 32>}, {transform_indices = @transform_3, window_bounds = array<i64: 16, 32>}]} {
    %c0 = arith.constant 0 : index
    %c0_0 = arith.constant 0 : index
    %0 = vector.load %arg1[%c0, %c0_0] : memref<16x32xf32, #tpu.memory_space<vmem>>, vector<16x32xf32>
    %cst = arith.constant dense<0.000000e+00> : vector<16xf32>
    %1 = vector.multi_reduction <add>, %0, %cst [1] : vector<16x32xf32> to vector<16xf32>
    %2 = vector.shape_cast %1 : vector<16xf32> to vector<16x1xf32>
    %cst_1 = arith.constant 3.200000e+01 : f32
    %3 = vector.broadcast %cst_1 : f32 to vector<16x1xf32>
    %4 = arith.divf %2, %3 : vector<16x1xf32>
    %5 = vector.broadcast %4 : vector<16x1xf32> to vector<16x32xf32>
    %6 = arith.subf %0, %5 : vector<16x32xf32>
    %7 = arith.mulf %6, %6 : vector<16x32xf32>
    %cst_2 = arith.constant dense<0.000000e+00> : vector<16xf32>
    %8 = vector.multi_reduction <add>, %7, %cst_2 [1] : vector<16x32xf32> to vector<16xf32>
    %9 = vector.shape_cast %8 : vector<16xf32> to vector<16x1xf32>
    %cst_3 = arith.constant 3.200000e+01 : f32
    %10 = vector.broadcast %cst_3 : f32 to vector<16x1xf32>
    %11 = arith.divf %9, %10 : vector<16x1xf32>
    %cst_4 = arith.constant 9.99999996E-13 : f32
    %12 = vector.broadcast %cst_4 : f32 to vector<16x1xf32>
    %13 = arith.addf %11, %12 : vector<16x1xf32>
    %14 = math.rsqrt %13 : vector<16x1xf32>
    %15 = vector.broadcast %14 : vector<16x1xf32> to vector<16x32xf32>
    %16 = arith.mulf %6, %15 : vector<16x32xf32>
    %c0_5 = arith.constant 0 : index
    %c0_6 = arith.constant 0 : index
    %17 = vector.load %arg2[%c0_5, %c0_6] : memref<1x32xf32, #tpu.memory_space<vmem>>, vector<1x32xf32>
    %18 = vector.broadcast %17 : vector<1x32xf32> to vector<16x32xf32>
    %19 = arith.mulf %16, %18 : vector<16x32xf32>
    %c0_7 = arith.constant 0 : index
    %c0_8 = arith.constant 0 : index
    %20 = vector.load %arg3[%c0_7, %c0_8] : memref<1x32xf32, #tpu.memory_space<vmem>>, vector<1x32xf32>
    %21 = vector.broadcast %20 : vector<1x32xf32> to vector<16x32xf32>
    %22 = arith.addf %19, %21 : vector<16x32xf32>
    %23 = arith.truncf %22 : vector<16x32xf32> to vector<16x32xbf16>
    %c0_9 = arith.constant 0 : index
    %c0_10 = arith.constant 0 : index
    %24 = vector.load %arg4[%c0_9, %c0_10] : memref<16x32xbf16, #tpu.memory_space<vmem>>, vector<16x32xbf16>
    tpu.vector_store %arg4[%c0_9, %c0_10], %23 {strides = array<i32>} : memref<16x32xbf16, #tpu.memory_space<vmem>>, vector<16x32xbf16>,
    return
  }
  func.func @transform_0(%arg0: i32) -> (i32, i32) {
    %c0_i32 = arith.constant 0 : i32
    %c0_i32_0 = arith.constant 0 : i32
    return %arg0, %c0_i32 : i32, i32
  }
  func.func @transform_1(%arg0: i32) -> (i32, i32) {
    %c0_i32 = arith.constant 0 : i32
    %c0_i32_0 = arith.constant 0 : i32
    %c0_i32_1 = arith.constant 0 : i32
    return %c0_i32, %c0_i32_0 : i32, i32
  }
  func.func @transform_2(%arg0: i32) -> (i32, i32) {
    %c0_i32 = arith.constant 0 : i32
    %c0_i32_0 = arith.constant 0 : i32
    %c0_i32_1 = arith.constant 0 : i32
    return %c0_i32, %c0_i32_0 : i32, i32
  }
  func.func @transform_3(%arg0: i32) -> (i32, i32) {
    %c0_i32 = arith.constant 0 : i32
    %c0_i32_0 = arith.constant 0 : i32
    return %arg0, %c0_i32 : i32, i32
  }
}

</mosaic_0001>

<llo_original>
// kernel: tpu_custom_call.1
$region0: #{tpu_custom_call.1}
  #allocation0 [shape = 'u32[]', space=smem, size = 0x4, offset = 0x4, fixed_abs, tag = 'smem constant byte address 0x4 - core index']
  #allocation1 [shape = 'u32[144,128]{1,0:T(1,128)}', space=vmem, size = 0x12000, scoped, tag = 'internal scratch']
  %s0 = inlined_call_operand.hbm [shape: f32[16,32], index: 0, kind: input, shape index: {}]
  %s1 = inlined_call_operand.vmem [shape: f32[1,32], index: 1, kind: input, shape index: {}]
  %s2 = inlined_call_operand.vmem [shape: f32[1,32], index: 2, kind: input, shape index: {}]
  %s3 = inlined_call_operand.hbm [shape: bf16[16,32], index: 3, kind: output, shape index: {}]
  %s4 = sld [smem:[#allocation0]]
  $region26: #{tpu_custom_call.1} parent=0
    _
  %s6 = ssub.s32 1, %s4
  %s7 = scalar_select 0, %s6, %s4
  $region1: #{tpu_custom_call.1} parent=0
    #allocation2 [shape = 'u8[8192]{0}', space=vmem, size = 0x2000, scoped, tag = 'input window, operand 0, single buffered']
    #allocation3 [shape = 's32[1]{0}', space=sflag, size = 0x4, scoped, tag = 'scoped memory for tpu_custom_call.1']
    #allocation4 [shape = 's32[1]{0}', space=sflag, size = 0x4, scoped, tag = 'scoped memory for tpu_custom_call.1']
    #allocation5 [shape = 'u8[4096]{0}', space=vmem, size = 0x1000, scoped, tag = 'output window, operand 0, single buffered']
    %8 = vsyncpa [#allocation3], 0
    %9 = vsyncpa [#allocation4], 0
    // Predicated region
    $region2: #{tpu_custom_call.1} parent=1 // pred_check
      _
    $region3: #{tpu_custom_call.1} parent=1 // pred_check_branch
      %11 = sbr.rel (0) target = $region5
    $region4: #{tpu_custom_call.1} parent=1 // pred_region
      %s13 = ssub.s32 256, 256
      %14 = vsyncadd [#allocation3], %s13
      %s15 = sshll.u32 [#allocation2], 4
      %s16 = int_to_ptr.vmem [resolvable:$true] %s15
      %21 = dma.hbm_to_vmem [thread:$0]  %s0, 256, %s16, [#allocation3], 128, 128, 8
    $region5: #{tpu_custom_call.1} parent=1 // pred_fallthru
      _
    // Predicated region
    $region6: #{tpu_custom_call.1} parent=1 // pred_check
      _
    $region7: #{tpu_custom_call.1} parent=1 // pred_check_branch
      %23 = sbr.rel (0) target = $region9
    $region8: #{tpu_custom_call.1} parent=1 // pred_region
      _
    $region9: #{tpu_custom_call.1} parent=1 // pred_fallthru
      _
    // Predicated region
    $region10: #{tpu_custom_call.1} parent=1 // pred_check
      _
    $region11: #{tpu_custom_call.1} parent=1 // pred_check_branch
      %25 = sbr.rel (0) target = $region13
    $region12: #{tpu_custom_call.1} parent=1 // pred_region
      _
    $region13: #{tpu_custom_call.1} parent=1 // pred_fallthru
      _
    // Predicated region
    $region14: #{tpu_custom_call.1} parent=1 // pred_check
      _
    $region15: #{tpu_custom_call.1} parent=1 // pred_check_branch
      %27 = sbr.rel (0) target = $region17
    $region16: #{tpu_custom_call.1} parent=1 // pred_region
      %28 = dma.done [#allocation3], 256
    $region17: #{tpu_custom_call.1} parent=1 // pred_fallthru
      _
    %v29 = vld [vmem:[#allocation2] sm:$0xff]
    %v30 = vld [vmem:[#allocation2 + $0x8] sm:$0xff]
    %vm31 = vcmask 261120
    %v32 = vsel %vm31, %v29, 0.0
    %33 = vadd.xlane.f32.xlu0 %v32
    %v34 = vpop.xlane.xlu0 %33
    %v35 = vsel %vm31, %v30, 0.0
    %36 = vadd.xlane.f32.xlu0 %v35
    %v37 = vpop.xlane.xlu0 %36
    %v38 = vrcp.pop 32.0
    %v39 = vmul.f32 %v34, %v38
    %v40 = vmul.f32 %v37, %v38
    %v41 = vsub.f32 %v29, %v39
    %v42 = vsub.f32 %v30, %v40
    %v43 = vmul.f32 %v41, %v41
    %v44 = vmul.f32 %v42, %v42
    %v45 = vsel %vm31, %v43, 0.0
    %46 = vadd.xlane.f32.xlu0 %v45
    %v47 = vpop.xlane.xlu0 %46
    %v48 = vsel %vm31, %v44, 0.0
    %49 = vadd.xlane.f32.xlu0 %v48
    %v50 = vpop.xlane.xlu0 %49
    %v51 = vmul.f32 %v47, %v38
    %v52 = vmul.f32 %v50, %v38
    %v53 = vadd.f32 %v51, 1e-12
    %v54 = vadd.f32 %v52, 1e-12
    %v55 = vrsqrt.pop %v53
    %v56 = vrsqrt.pop %v54
    %v57 = vmul.f32 %v41, %v55
    %v58 = vmul.f32 %v42, %v56
    %v59 = vld [vmem:[%s1] sm:$0x1]
    %v61 = vlaneseq
    %v62 = vshrl.u32 %v61, 7
    %v63 = vsub.s32 0, %v62
    %v64 = vrot.slane %v59, %v63
    %v66 = vmul.f32 %v57, %v64
    %v67 = vmul.f32 %v58, %v64
    %v68 = vld [vmem:[%s2] sm:$0x1]
    %v70 = vlaneseq
    %v71 = vshrl.u32 %v70, 7
    %v72 = vsub.s32 0, %v71
    %v73 = vrot.slane %v68, %v72
    %v75 = vadd.f32 %v66, %v73
    %v76 = vadd.f32 %v67, %v73
    %v77 = vpack.c.bf16 %v76, %v75
    %v79 = vunpack.c.l.b16 %v77
    %v80 = vunpack.c.h.b16 %v77
    %v81 = vpack.c.b16 %v79, %v79
    %v82 = vpack.c.b16 %v80, %v80
    %vm85 = vcmask 257024
    %86 = vst.msk [vmem:[#allocation5] sm:$0xf] %vm85, %v81
    %87 = vst.msk [vmem:[#allocation5 + $0x4] sm:$0xf] %vm85, %v82
    // Predicated region
    $region18: #{tpu_custom_call.1} parent=1 // pred_check
      _
    $region19: #{tpu_custom_call.1} parent=1 // pred_check_branch
      %89 = sbr.rel (0) target = $region21
    $region20: #{tpu_custom_call.1} parent=1 // pred_region
      %s91 = ssub.s32 128, 128
      %92 = vsyncadd [#allocation4], %s91
      %s93 = sshll.u32 [#allocation5], 4
      %s94 = int_to_ptr.vmem [resolvable:$true] %s93
      %99 = dma.vmem_to_hbm [thread:$0]  %s94, 128, %s3, [#allocation4], 64, 64, 4
    $region21: #{tpu_custom_call.1} parent=1 // pred_fallthru
      _
    // Predicated region
    $region22: #{tpu_custom_call.1} parent=1 // pred_check
      _
    $region23: #{tpu_custom_call.1} parent=1 // pred_check_branch
      %101 = sbr.rel (0) target = $region25
    $region24: #{tpu_custom_call.1} parent=1 // pred_region
      %102 = dma.done [#allocation4], 128
    $region25: #{tpu_custom_call.1} parent=1 // pred_fallthru
      _
    %103 = vsyncpa [#allocation3], 1
    %104 = vsyncpa [#allocation4], 1

</llo_original>
